<compile_context>
chip_gen: v5e
topology: v5e:2x2
jax: 0.10.0
libtpu: 0.0.40
codegen_flags: <defaults>
</compile_context>

<pallas_src>
import jax
import jax.numpy as jnp
from jax.experimental import pallas as pl
from jax.experimental.pallas import tpu as pltpu


def _round_up(x: int, m: int) -> int:
    return ((x + m - 1) // m) * m


def _ccg_layer_kernel(x_ref, w_ref, b_ref, o_ref, acc_ref):
    """One (i, j, k) grid step: accumulate x_tile @ w_tile; finalize with bias+sigmoid."""
    k = pl.program_id(2)

    @pl.when(k == 0)
    def _():
        acc_ref[...] = jnp.zeros_like(acc_ref)

    # MXU matmul (bf16 inputs, f32 accumulation).
    acc_ref[...] += jnp.dot(
        x_ref[...], w_ref[...], preferred_element_type=jnp.float32
    )

    @pl.when(k == pl.num_programs(2) - 1)
    def _():
        z = acc_ref[...] + b_ref[...]  # (tm, tn) + (1, tn), f32 epilogue
        # sigmoid(z) == 0.5 * (tanh(z / 2) + 1): single EUP op per element.
        o_ref[...] = (0.5 * (jnp.tanh(0.5 * z) + 1.0)).astype(o_ref.dtype)


@jax.jit
def ccg_dlnn_layer_forward(x, w, b):
    """x: (B, D), w: (D, N), b: (N,)  ->  sigmoid(x @ w + b) as (B, N) float32."""
    M, K = x.shape
    K2, N = w.shape
    assert K == K2 and b.shape == (N,)

    # Tile sizes: lane axis multiples of 128, sublane axis multiples of 16
    # (bf16 packing).  Capped so double-buffered tiles + f32 accumulator stay
    # around ~3 MiB even at the largest tiles -> safe on v7x's smaller VMEM.
    tm = min(256, _round_up(M, 16))
    tk = min(512, _round_up(K, 128))
    tn = min(512, _round_up(N, 128))

    Mp = _round_up(M, tm)
    Kp = _round_up(K, tk)
    Np = _round_up(N, tn)

    # v7x has 2 TensorCores: make sure at least one "parallel" grid axis has
    # >= 2 blocks so megacore sharding has something to split (cheap zero pad;
    # neutral on single-TC v5e/v6e).
    if Mp // tm == 1 and Np // tn == 1:
        Mp = 2 * tm

    grid = (Mp // tm, Np // tn, Kp // tk)

    # bf16 MXU inputs (halves HBM bytes, full-rate MXU on v6e/v7x); zero
    # padding keeps the valid region numerically exact.
    x_p = jnp.pad(x, ((0, Mp - M), (0, Kp - K))).astype(jnp.bfloat16)
    w_p = jnp.pad(w, ((0, Kp - K), (0, Np - N))).astype(jnp.bfloat16)
    b_p = jnp.pad(b.astype(jnp.float32), (0, Np - N)).reshape(1, Np)

    out_p = pl.pallas_call(
        _ccg_layer_kernel,
        out_shape=jax.ShapeDtypeStruct((Mp, Np), jnp.float32),
        grid_spec=pltpu.PrefetchScalarGridSpec(
            num_scalar_prefetch=0,
            grid=grid,
            in_specs=[
                pl.BlockSpec((tm, tk), lambda i, j, k: (i, k)),
                pl.BlockSpec((tk, tn), lambda i, j, k: (k, j)),
                pl.BlockSpec((1, tn), lambda i, j, k: (0, j)),
            ],
            out_specs=pl.BlockSpec((tm, tn), lambda i, j, k: (i, j)),
            scratch_shapes=[pltpu.VMEM((tm, tn), jnp.float32)],
        ),
        compiler_params=pltpu.CompilerParams(
            dimension_semantics=("parallel", "parallel", "arbitrary"),
            vmem_limit_bytes=32 * 1024 * 1024,
        ),
    )(x_p, w_p, b_p)

    # Slice the lane-dense padded result back to the logical (B, N) shape.
    return out_p[:M, :N]


def ccg_dlnn_layer_forward_ref(x, w, b):
    z = jnp.dot(x, w, precision=jax.lax.Precision.HIGHEST) + b.reshape(1, -1)
    return jax.nn.sigmoid(z)


if __name__ == "__main__":
    # Small, deterministic example consistent with the module:
    #   n_inputs = 32, len(layer_nodes) = 4, batch = 8
    batch = 8
    n_inputs = 32
    n_nodes = 4
    weight_multiplier = 0.5

    key = jax.random.PRNGKey(0)
    kx, kw, kb = jax.random.split(key, 3)

    x = jax.random.normal(kx, (batch, n_inputs), dtype=jnp.float32)
    # Node weights initialized as in cascade-correlation candidates:
    # uniform in [-weight_multiplier, weight_multiplier].
    w = jax.random.uniform(
        kw, (n_inputs, n_nodes), dtype=jnp.float32,
        minval=-weight_multiplier, maxval=weight_multiplier)
    b = jax.random.uniform(
        kb, (n_nodes,), dtype=jnp.float32,
        minval=-weight_multiplier, maxval=weight_multiplier)

    out = ccg_dlnn_layer_forward(x, w, b)
    out = jax.block_until_ready(out)

    ref = ccg_dlnn_layer_forward_ref(x, w, b)
    assert out.shape == (batch, n_nodes)
    # Tolerance accounts for bf16 MXU inputs (f32 accumulation); sigmoid output
    # is bounded in (0, 1) so absolute error is the right metric here.
    assert jnp.allclose(out, ref, atol=2e-2, rtol=0.0)

    print("KERNEL_OK")
</pallas_src>

<mosaic_0001>
module attributes {stable_mosaic.version = 11 : i64} {
  func.func @_ccg_layer_kernel(%arg0: i32, %arg1: i32, %arg2: i32, %arg3: memref<16x128xbf16, #tpu.memory_space<vmem>>, %arg4: memref<128x128xbf16, #tpu.memory_space<vmem>>, %arg5: memref<1x128xf32, #tpu.memory_space<vmem>>, %arg6: memref<16x128xf32, #tpu.memory_space<vmem>>, %arg7: memref<16x128xf32, #tpu.memory_space<vmem>>) attributes {dimension_semantics = [#tpu.dimension_semantics<parallel>, #tpu.dimension_semantics<parallel>, #tpu.dimension_semantics<arbitrary>], iteration_bounds = array<i64: 2, 1, 1>, scalar_prefetch = 0 : i64, scratch_operands = 1 : i64, tpu.core_type = #tpu.core_type<tc>, window_params = [{transform_indices = @transform_0, window_bounds = array<i64: 16, 128>}, {transform_indices = @transform_1, window_bounds = array<i64: 128, 128>}, {transform_indices = @transform_2, window_bounds = array<i64: 1, 128>}, {transform_indices = @transform_3, window_bounds = array<i64: 16, 128>}]} {
    %c0_i32 = arith.constant 0 : i32
    %0 = arith.cmpi eq, %arg2, %c0_i32 : i32
    %1 = arith.extui %0 : i1 to i32
    %c0_i32_0 = arith.constant 0 : i32
    %2 = arith.cmpi ne, %1, %c0_i32_0 : i32
    scf.if %2 {
      %cst_10 = arith.constant 0.000000e+00 : f32
      %12 = vector.broadcast %cst_10 : f32 to vector<16x128xf32>
      %c0_11 = arith.constant 0 : index
      %c0_12 = arith.constant 0 : index
      %13 = vector.load %arg7[%c0_11, %c0_12] : memref<16x128xf32, #tpu.memory_space<vmem>>, vector<16x128xf32>
      tpu.vector_store %arg7[%c0_11, %c0_12], %12 {strides = array<i32>} : memref<16x128xf32, #tpu.memory_space<vmem>>, vector<16x128xf32>,
    } else {
    }
    %c0 = arith.constant 0 : index
    %c0_1 = arith.constant 0 : index
    %3 = vector.load %arg7[%c0, %c0_1] : memref<16x128xf32, #tpu.memory_space<vmem>>, vector<16x128xf32>
    %c0_2 = arith.constant 0 : index
    %c0_3 = arith.constant 0 : index
    %4 = vector.load %arg3[%c0_2, %c0_3] : memref<16x128xbf16, #tpu.memory_space<vmem>>, vector<16x128xbf16>
    %c0_4 = arith.constant 0 : index
    %c0_5 = arith.constant 0 : index
    %5 = vector.load %arg4[%c0_4, %c0_5] : memref<128x128xbf16, #tpu.memory_space<vmem>>, vector<128x128xbf16>
    %cst = arith.constant dense<0.000000e+00> : vector<16x128xf32>
    %6 = tpu.matmul %4, %5, %cst {dimension_numbers = #tpu.dot_dimension_numbers<[1], [0], [0], [1], [0, 0, 1, 1], [], []>} : vector<16x128xbf16>, vector<128x128xbf16>, vector<16x128xf32> -> vector<16x128xf32>
    %7 = arith.addf %3, %6 : vector<16x128xf32>
    %c0_6 = arith.constant 0 : index
    %c0_7 = arith.constant 0 : index
    %8 = vector.load %arg7[%c0_6, %c0_7] : memref<16x128xf32, #tpu.memory_space<vmem>>, vector<16x128xf32>
    tpu.vector_store %arg7[%c0_6, %c0_7], %7 {strides = array<i32>} : memref<16x128xf32, #tpu.memory_space<vmem>>, vector<16x128xf32>,
    %c0_i32_8 = arith.constant 0 : i32
    %9 = arith.cmpi eq, %arg2, %c0_i32_8 : i32
    %10 = arith.extui %9 : i1 to i32
    %c0_i32_9 = arith.constant 0 : i32
    %11 = arith.cmpi ne, %10, %c0_i32_9 : i32
    scf.if %11 {
      %c0_10 = arith.constant 0 : index
      %c0_11 = arith.constant 0 : index
      %12 = vector.load %arg7[%c0_10, %c0_11] : memref<16x128xf32, #tpu.memory_space<vmem>>, vector<16x128xf32>
      %c0_12 = arith.constant 0 : index
      %c0_13 = arith.constant 0 : index
      %13 = vector.load %arg5[%c0_12, %c0_13] : memref<1x128xf32, #tpu.memory_space<vmem>>, vector<1x128xf32>
      %14 = vector.broadcast %13 : vector<1x128xf32> to vector<16x128xf32>
      %15 = arith.addf %12, %14 : vector<16x128xf32>
      %cst_14 = arith.constant 5.000000e-01 : f32
      %16 = vector.broadcast %cst_14 : f32 to vector<16x128xf32>
      %17 = arith.mulf %16, %15 : vector<16x128xf32>
      %18 = math.tanh %17 : vector<16x128xf32>
      %cst_15 = arith.constant 1.000000e+00 : f32
      %19 = vector.broadcast %cst_15 : f32 to vector<16x128xf32>
      %20 = arith.addf %18, %19 : vector<16x128xf32>
      %cst_16 = arith.constant 5.000000e-01 : f32
      %21 = vector.broadcast %cst_16 : f32 to vector<16x128xf32>
      %22 = arith.mulf %21, %20 : vector<16x128xf32>
      %c0_17 = arith.constant 0 : index
      %c0_18 = arith.constant 0 : index
      %23 = vector.load %arg6[%c0_17, %c0_18] : memref<16x128xf32, #tpu.memory_space<vmem>>, vector<16x128xf32>
      tpu.vector_store %arg6[%c0_17, %c0_18], %22 {strides = array<i32>} : memref<16x128xf32, #tpu.memory_space<vmem>>, vector<16x128xf32>,
    } else {
    }
    return
  }
  func.func @transform_0(%arg0: i32, %arg1: i32, %arg2: i32) -> (i32, i32) {
    %c0_i32 = arith.constant 0 : i32
    return %arg0, %arg2 : i32, i32
  }
  func.func @transform_1(%arg0: i32, %arg1: i32, %arg2: i32) -> (i32, i32) {
    %c0_i32 = arith.constant 0 : i32
    return %arg2, %arg1 : i32, i32
  }
  func.func @transform_2(%arg0: i32, %arg1: i32, %arg2: i32) -> (i32, i32) {
    %c0_i32 = arith.constant 0 : i32
    %c0_i32_0 = arith.constant 0 : i32
    return %c0_i32, %arg1 : i32, i32
  }
  func.func @transform_3(%arg0: i32, %arg1: i32, %arg2: i32) -> (i32, i32) {
    %c0_i32 = arith.constant 0 : i32
    return %arg0, %arg1 : i32, i32
  }
}

</mosaic_0001>

<llo_original>
// kernel: ccg_dlnn_layer_forward.1
$region0: #{ccg_dlnn_layer_forward.1}
  #allocation0 [shape = 'u32[]', space=smem, size = 0x4, offset = 0x4, fixed_abs, tag = 'smem constant byte address 0x4 - core index']
  #allocation1 [shape = 'u32[72,128]{1,0:T(1,128)}', space=vmem, size = 0x9000, scoped, tag = 'internal scratch']
  #allocation2 [shape = 'f32[16,128]{1,0:T(8,128)}', space=vmem, size = 0x2000, scoped, tag = 'scratch operand']
  %s0 = inlined_call_operand.vmem [shape: bf16[32,128], index: 0, kind: input, shape index: {}]
  %s1 = inlined_call_operand.vmem [shape: bf16[128,128], index: 1, kind: input, shape index: {}]
  %s2 = inlined_call_operand.vmem [shape: f32[1,128], index: 2, kind: input, shape index: {}]
  %s3 = inlined_call_operand.vmem [shape: f32[32,128], index: 3, kind: output, shape index: {}]
  %s4 = sld [smem:[#allocation0]]
  $region53: #{ccg_dlnn_layer_forward.1} parent=0
    _
  %s6 = ssub.s32 1, %s4
  %s7 = scalar_select 0, %s6, %s4
  loop: start=0, step=1, limit=4
  $region2: #{ccg_dlnn_layer_forward.1} parent=0 // loop_pre_header
    _
  $region3: #{ccg_dlnn_layer_forward.1} parent=0 // loop_header
    %s9 = sphi 0, %s13
    %p10 = scmp.ge.s32.totalorder %s9, 4
    %s16 = sphi 0, %s35
    %s17 = sphi 0, %s31
    %s18 = sphi 0, %s27
    %s19 = sphi 0, %s16
    %s20 = sphi 0, %s17
    %s21 = sphi 0, %s18
    %s22 = sphi 0, %s19
    %s23 = sphi 0, %s20
    %s24 = sphi 0, %s21
    %s40 = sphi 0, %s42
    %s43 = sphi 0, %s40
    %s44 = sphi 0, %s43
    %s60 = sphi 0, %s44
    %s68 = sphi 0, %s70
    %s71 = sphi 0, %s68
    %s72 = sphi 0, %s71
    %s88 = sphi 0, %s72
    %s94 = sphi 0, %s96
    %s97 = sphi 0, %s94
    %s98 = sphi 0, %s97
    %s114 = sphi 0, %s98
    %s122 = sphi 0, %s124
    %s125 = sphi 0, %s122
    %s126 = sphi 0, %s125
    %s142 = sphi 0, %s126
  $region4: #{ccg_dlnn_layer_forward.1} parent=0 // loop_header_branch
    %12 = sbr.rel (%p10) target = $region8
  $region5: #{ccg_dlnn_layer_forward.1} parent=0 // loop_body
    %s14 = ssub.s32 %s9, 1
    %s15 = ssub.s32 %s9, 2
    %s25 = sadd.s32 1, %s18
    %p26 = scmp.ge.s32.totalorder %s25, 1
    %s27 = scalar_select %p26, 0, %s25
    %s28 = sadd.s32 1, %s17
    %s29 = scalar_select %p26, %s28, %s17
    %p30 = scmp.ge.s32.totalorder %s29, 1
    %s31 = scalar_select %p30, 0, %s29
    %s32 = sadd.s32 1, %s16
    %s33 = scalar_select %p30, %s32, %s16
    %p34 = scmp.ge.s32.totalorder %s33, 2
    %s35 = scalar_select %p34, 0, %s33
    %s36 = ssub.s32 %s16, %s35
    %s37 = ssub.s32 %s18, %s27
    %s38 = sor.u32 %s36, %s37
    %p39 = scmp.eq.s32.totalorder %s38, 0
    %s41 = sadd.s32 %s40, 1
    %s42 = scalar_select %p39, %s40, %s41
    %p45 = pneg %p39
    %p46 = scmp.eq.s32.totalorder %s9, 1
    %p47 = por %p45, %p46
    %p48 = scmp.ne.s32.totalorder %s40, %s43
    %p49 = scmp.eq.s32.totalorder %s9, 0
    %p50 = por %p48, %p49
    %p51 = scmp.ne.s32.totalorder %s40, %s43
    %p52 = scmp.eq.s32.totalorder %s14, 1
    %p53 = por %p51, %p52
    %p54 = scmp.ne.s32.totalorder %s43, %s44
    %p55 = scmp.eq.s32.totalorder %s14, 0
    %p56 = por %p54, %p55
    %p57 = scmp.ne.s32.totalorder %s43, %s44
    %p58 = scmp.eq.s32.totalorder %s15, 1
    %p59 = por %p57, %p58
    %p61 = scmp.ne.s32.totalorder %s44, %s60
    %p62 = scmp.eq.s32.totalorder %s15, 0
    %p63 = por %p61, %p62
    %s64 = ssub.s32 %s18, %s27
    %s65 = ssub.s32 %s17, %s31
    %s66 = sor.u32 %s64, %s65
    %p67 = scmp.eq.s32.totalorder %s66, 0
    %s69 = sadd.s32 %s68, 1
    %s70 = scalar_select %p67, %s68, %s69
    %p73 = pneg %p67
    %p74 = scmp.eq.s32.totalorder %s9, 1
    %p75 = por %p73, %p74
    %p76 = scmp.ne.s32.totalorder %s68, %s71
    %p77 = scmp.eq.s32.totalorder %s9, 0
    %p78 = por %p76, %p77
    %p79 = scmp.ne.s32.totalorder %s68, %s71
    %p80 = scmp.eq.s32.totalorder %s14, 1
    %p81 = por %p79, %p80
    %p82 = scmp.ne.s32.totalorder %s71, %s72
    %p83 = scmp.eq.s32.totalorder %s14, 0
    %p84 = por %p82, %p83
    %p85 = scmp.ne.s32.totalorder %s71, %s72
    %p86 = scmp.eq.s32.totalorder %s15, 1
    %p87 = por %p85, %p86
    %p89 = scmp.ne.s32.totalorder %s72, %s88
    %p90 = scmp.eq.s32.totalorder %s15, 0
    %p91 = por %p89, %p90
    %s92 = ssub.s32 %s17, %s31
    %p93 = scmp.eq.s32.totalorder %s92, 0
    %s95 = sadd.s32 %s94, 1
    %s96 = scalar_select %p93, %s94, %s95
    %p99 = pneg %p93
    %p100 = scmp.eq.s32.totalorder %s9, 1
    %p101 = por %p99, %p100
    %p102 = scmp.ne.s32.totalorder %s94, %s97
    %p103 = scmp.eq.s32.totalorder %s9, 0
    %p104 = por %p102, %p103
    %p105 = scmp.ne.s32.totalorder %s94, %s97
    %p106 = scmp.eq.s32.totalorder %s14, 1
    %p107 = por %p105, %p106
    %p108 = scmp.ne.s32.totalorder %s97, %s98
    %p109 = scmp.eq.s32.totalorder %s14, 0
    %p110 = por %p108, %p109
    %p111 = scmp.ne.s32.totalorder %s97, %s98
    %p112 = scmp.eq.s32.totalorder %s15, 1
    %p113 = por %p111, %p112
    %p115 = scmp.ne.s32.totalorder %s98, %s114
    %p116 = scmp.eq.s32.totalorder %s15, 0
    %p117 = por %p115, %p116
    %s118 = ssub.s32 %s16, %s35
    %s119 = ssub.s32 %s17, %s31
    %s120 = sor.u32 %s118, %s119
    %p121 = scmp.eq.s32.totalorder %s120, 0
    %s123 = sadd.s32 %s122, 1
    %s124 = scalar_select %p121, %s122, %s123
    %p127 = pneg %p121
    %p128 = scmp.eq.s32.totalorder %s9, 1
    %p129 = por %p127, %p128
    %p130 = scmp.ne.s32.totalorder %s122, %s125
    %p131 = scmp.eq.s32.totalorder %s9, 0
    %p132 = por %p130, %p131
    %p133 = scmp.ne.s32.totalorder %s122, %s125
    %p134 = scmp.eq.s32.totalorder %s14, 1
    %p135 = por %p133, %p134
    %p136 = scmp.ne.s32.totalorder %s125, %s126
    %p137 = scmp.eq.s32.totalorder %s14, 0
    %p138 = por %p136, %p137
    %p139 = scmp.ne.s32.totalorder %s125, %s126
    %p140 = scmp.eq.s32.totalorder %s15, 1
    %p141 = por %p139, %p140
    %p143 = scmp.ne.s32.totalorder %s126, %s142
    %p144 = scmp.eq.s32.totalorder %s15, 0
    %p145 = por %p143, %p144
    %p146 = scmp.le.s32.totalorder 1, %s9
    %p147 = scmp.lt.s32.totalorder %s9, 3
    %p148 = pnand %p146, %p147
    %p149 = pneg %p148
    // Predicated region
    $region9: #{ccg_dlnn_layer_forward.1} parent=5 // pred_check
      _
    $region10: #{ccg_dlnn_layer_forward.1} parent=5 // pred_check_branch
      %151 = sbr.rel (%p148) target = $region12
    $region11: #{ccg_dlnn_layer_forward.1} parent=5 // pred_region
      %s152 = ssub.s32 %s9, 1
      // Predicated region
      $region13: #{ccg_dlnn_layer_forward.1} parent=11 // pred_check
        %p153 = pneg %p84
      $region14: #{ccg_dlnn_layer_forward.1} parent=11 // pred_check_branch
        %155 = sbr.rel (%p153) target = $region16
      $region15: #{ccg_dlnn_layer_forward.1} parent=11 // pred_region
        %s156 = smul.u32 16, %s21
        %p157 = scmp.lt.s32.totalorder %s156, 15
        %s158 = scalar_select %p157, %s156, 15
        %p159 = scmp.lt.s32.totalorder %s20, 0
        %s160 = scalar_select %p159, %s20, 0
        %s161 = sadd.s32 %s160, %s158
        %s162 = smul.addr %s161, 4
        %s163 = scalar_lea.vmem %s1, %s162
        %s164 = smul.u32 16, %s21
      $region16: #{ccg_dlnn_layer_forward.1} parent=11 // pred_fallthru
        _
      // Predicated region
      $region17: #{ccg_dlnn_layer_forward.1} parent=11 // pred_check
        %p165 = pneg %p110
      $region18: #{ccg_dlnn_layer_forward.1} parent=11 // pred_check_branch
        %167 = sbr.rel (%p165) target = $region20
      $region19: #{ccg_dlnn_layer_forward.1} parent=11 // pred_region
        %p168 = scmp.lt.s32.totalorder %s20, 0
        %s169 = scalar_select %p168, %s20, 0
        %s170 = scalar_lea.vmem %s2, %s169
      $region20: #{ccg_dlnn_layer_forward.1} parent=11 // pred_fallthru
        _
    $region12: #{ccg_dlnn_layer_forward.1} parent=5 // pred_fallthru
      _
    %p171 = scmp.lt.s32.totalorder %s9, 2
    // Predicated region
    $region21: #{ccg_dlnn_layer_forward.1} parent=5 // pred_check
      %p172 = pneg %p171
    $region22: #{ccg_dlnn_layer_forward.1} parent=5 // pred_check_branch
      %174 = sbr.rel (%p172) target = $region24
    $region23: #{ccg_dlnn_layer_forward.1} parent=5 // pred_region
      // Predicated region
      $region25: #{ccg_dlnn_layer_forward.1} parent=23 // pred_check
        %p175 = pneg %p50
      $region26: #{ccg_dlnn_layer_forward.1} parent=23 // pred_check_branch
        %177 = sbr.rel (%p175) target = $region28
      $region27: #{ccg_dlnn_layer_forward.1} parent=23 // pred_region
        %s178 = smul.u32 2, %s16
        %p179 = scmp.lt.s32.totalorder %s178, 3
        %s180 = scalar_select %p179, %s178, 3
        %p181 = scmp.lt.s32.totalorder %s18, 0
        %s182 = scalar_select %p181, %s18, 0
        %s183 = sadd.s32 %s182, %s180
        %s184 = smul.addr %s183, 4
        %s185 = scalar_lea.vmem %s0, %s184
        %s186 = smul.u32 2, %s16
      $region28: #{ccg_dlnn_layer_forward.1} parent=23 // pred_fallthru
        _
    $region24: #{ccg_dlnn_layer_forward.1} parent=5 // pred_fallthru
      _
    %p187 = scmp.le.s32.totalorder 1, %s9
    %p188 = scmp.lt.s32.totalorder %s9, 3
    %p189 = pnand %p187, %p188
    %p190 = pneg %p189
    // Predicated region
    $region29: #{ccg_dlnn_layer_forward.1} parent=5 // pred_check
      _
    $region30: #{ccg_dlnn_layer_forward.1} parent=5 // pred_check_branch
      %192 = sbr.rel (%p189) target = $region32
    $region31: #{ccg_dlnn_layer_forward.1} parent=5 // pred_region
      %s193 = ssub.s32 %s9, 1
      %s194 = smul.u32 2, %s19
      %p195 = scmp.lt.s32.totalorder %s194, 3
      %s196 = scalar_select %p195, %s194, 3
      %p197 = scmp.lt.s32.totalorder %s21, 0
      %s198 = scalar_select %p197, %s21, 0
      %s199 = sadd.s32 %s198, %s196
      %s200 = smul.addr %s199, 4
      %s201 = scalar_lea.vmem %s0, %s200
      %p202 = pneg %p56
      %p203 = pneg %p53
      %s204 = smul.u32 16, %s21
      %p205 = scmp.lt.s32.totalorder %s204, 15
      %s206 = scalar_select %p205, %s204, 15
      %p207 = scmp.lt.s32.totalorder %s20, 0
      %s208 = scalar_select %p207, %s20, 0
      %s209 = sadd.s32 %s208, %s206
      %s210 = smul.addr %s209, 4
      %s211 = scalar_lea.vmem %s1, %s210
      %p212 = pneg %p84
      %p213 = pneg %p81
      %p214 = scmp.lt.s32.totalorder %s20, 0
      %s215 = scalar_select %p214, %s20, 0
      %s216 = scalar_lea.vmem %s2, %s215
      %p217 = pneg %p110
      %p218 = pneg %p107
      %p219 = pneg %p138
      %p220 = pneg %p135
      %s221 = smul.u32 2, %s19
      %p222 = scmp.lt.s32.totalorder %s221, 3
      %s223 = scalar_select %p222, %s221, 3
      %p224 = scmp.lt.s32.totalorder %s20, 0
      %s225 = scalar_select %p224, %s20, 0
      %s226 = sadd.s32 %s225, %s223
      %s227 = smul.addr %s226, 8
      %s228 = scalar_lea.vmem %s3, %s227
      %s229 = smul.u32 2, %s19
      %p230 = scmp.lt.s32.totalorder %s229, 3
      %s231 = scalar_select %p230, %s229, 3
      %p232 = scmp.lt.s32.totalorder %s21, 0
      %s233 = scalar_select %p232, %s21, 0
      %s234 = sadd.s32 %s233, %s231
      %s235 = smul.addr %s234, 4
      %s236 = scalar_lea.vmem %s0, %s235
      %s237 = smul.u32 2, %s19
      %s238 = smul.u32 16, %s21
      %p239 = scmp.lt.s32.totalorder %s238, 15
      %s240 = scalar_select %p239, %s238, 15
      %p241 = scmp.lt.s32.totalorder %s20, 0
      %s242 = scalar_select %p241, %s20, 0
      %s243 = sadd.s32 %s242, %s240
      %s244 = smul.addr %s243, 4
      %s245 = scalar_lea.vmem %s1, %s244
      %s246 = smul.u32 16, %s21
      %p247 = scmp.lt.s32.totalorder %s20, 0
      %s248 = scalar_select %p247, %s20, 0
      %s249 = scalar_lea.vmem %s2, %s248
      %s250 = smul.u32 2, %s19
      %p251 = scmp.lt.s32.totalorder %s250, 3
      %s252 = scalar_select %p251, %s250, 3
      %p253 = scmp.lt.s32.totalorder %s20, 0
      %s254 = scalar_select %p253, %s20, 0
      %s255 = sadd.s32 %s254, %s252
      %s256 = smul.addr %s255, 8
      %s257 = scalar_lea.vmem %s3, %s256
      %s258 = smul.u32 2, %s19
      %p259 = scmp.eq.s32.totalorder %s21, 0
      // Predicated region
      $region33: #{ccg_dlnn_layer_forward.1} parent=31 // pred_check
        %p260 = pneg %p259
      $region34: #{ccg_dlnn_layer_forward.1} parent=31 // pred_check_branch
        %262 = sbr.rel (%p260) target = $region36
      $region35: #{ccg_dlnn_layer_forward.1} parent=31 // pred_region
        %263 = vst [vmem:[#allocation2] sm:$0xff] 0.0
        %264 = vst [vmem:[#allocation2 + $0x8] sm:$0xff] 0.0
      $region36: #{ccg_dlnn_layer_forward.1} parent=31 // pred_fallthru
        _
      %v265 = vld [vmem:[#allocation2] sm:$0xff]
      %v266 = vld [vmem:[#allocation2 + $0x8] sm:$0xff]
      %v267 = vld [vmem:[%s236] sm:$0xf]
      %v268 = vld [vmem:[%s236 + $0x4] sm:$0xf]
      %v269 = vld [vmem:[%s245] sm:$0xf]
      %v270 = vld [vmem:[%s245 + $0x4] sm:$0xf]
      %v271 = vld [vmem:[%s245 + $0x8] sm:$0xf]
      %v272 = vld [vmem:[%s245 + $0xc] sm:$0xf]
      %v273 = vld [vmem:[%s245 + $0x10] sm:$0xf]
      %v274 = vld [vmem:[%s245 + $0x14] sm:$0xf]
      %v275 = vld [vmem:[%s245 + $0x18] sm:$0xf]
      %v276 = vld [vmem:[%s245 + $0x1c] sm:$0xf]
      %v277 = vld [vmem:[%s245 + $0x20] sm:$0xf]
      %v278 = vld [vmem:[%s245 + $0x24] sm:$0xf]
      %v279 = vld [vmem:[%s245 + $0x28] sm:$0xf]
      %v280 = vld [vmem:[%s245 + $0x2c] sm:$0xf]
      %v281 = vld [vmem:[%s245 + $0x30] sm:$0xf]
      %v282 = vld [vmem:[%s245 + $0x34] sm:$0xf]
      %v283 = vld [vmem:[%s245 + $0x38] sm:$0xf]
      %v284 = vld [vmem:[%s245 + $0x3c] sm:$0xf]
      %v287 = vunpack.c.l.b16 %v267
      %v288 = vunpack.c.l.b16 %v268
      %v289 = vpack.c.b16 %v288, %v287
      %v307 = vunpack.c.l.b16 %v269
      %v308 = vunpack.c.l.b16 %v270
      %v309 = vunpack.c.l.b16 %v271
      %v310 = vunpack.c.l.b16 %v272
      %v311 = vunpack.c.l.b16 %v273
      %v312 = vunpack.c.l.b16 %v274
      %v313 = vunpack.c.l.b16 %v275
      %v314 = vunpack.c.l.b16 %v276
      %v315 = vunpack.c.l.b16 %v277
      %v316 = vunpack.c.l.b16 %v278
      %v317 = vunpack.c.l.b16 %v279
      %v318 = vunpack.c.l.b16 %v280
      %v319 = vunpack.c.l.b16 %v281
      %v320 = vunpack.c.l.b16 %v282
      %v321 = vunpack.c.l.b16 %v283
      %v322 = vunpack.c.l.b16 %v284
      %v323 = vpack.c.b16 %v308, %v307
      %v324 = vpack.c.b16 %v310, %v309
      %v325 = vpack.c.b16 %v312, %v311
      %v326 = vpack.c.b16 %v314, %v313
      %v327 = vpack.c.b16 %v316, %v315
      %v328 = vpack.c.b16 %v318, %v317
      %v329 = vpack.c.b16 %v320, %v319
      %v330 = vpack.c.b16 %v322, %v321
      %339 = vmatpush.bf16.msra.mxu0 %v330
      %340 = vmatpush.bf16.msra.mxu0 %v329
      %341 = vmatpush.bf16.msra.mxu0 %v328
      %342 = vmatpush.bf16.msra.mxu0 %v327
      %343 = vmatpush.bf16.msra.mxu0 %v326
      %344 = vmatpush.bf16.msra.mxu0 %v325
      %345 = vmatpush.bf16.msra.mxu0 %v324
      %346 = vmatpush.bf16.msra.mxu0 %v323
      %347 = vmatmul.bf16.gmra.mxu0 %v289
      %v348 = vpop.f32.mrf.mxu0
      %v349 = vadd.f32 0.0, %v348
      %v350 = vpop.f32.mrf.mxu0
      %v351 = vadd.f32 0.0, %v350
      %352 = vdwg.mxu0
      %v353 = vadd.f32 %v265, %v349
      %v354 = vadd.f32 %v266, %v351
      %355 = vst [vmem:[#allocation2] sm:$0xff] %v353
      %356 = vst [vmem:[#allocation2 + $0x8] sm:$0xff] %v354
      // Predicated region
      $region37: #{ccg_dlnn_layer_forward.1} parent=31 // pred_check
        %p357 = pneg %p259
      $region38: #{ccg_dlnn_layer_forward.1} parent=31 // pred_check_branch
        %359 = sbr.rel (%p357) target = $region40
      $region39: #{ccg_dlnn_layer_forward.1} parent=31 // pred_region
        %v360 = vld [vmem:[#allocation2] sm:$0xff]
        %v361 = vld [vmem:[#allocation2 + $0x8] sm:$0xff]
        %v362 = vld [vmem:[%s249] sm:$0x1]
        %v364 = vperm.slane %v362, 0
        %v366 = vadd.f32 %v360, %v364
        %v367 = vadd.f32 %v361, %v364
        %v368 = vmul.f32 %v366, 0.5
        %v369 = vmul.f32 %v367, 0.5
        %v370 = vtanh.pop %v368
        %v371 = vtanh.pop %v369
        %v372 = vadd.f32 %v370, 1.0
        %v373 = vadd.f32 %v371, 1.0
        %v374 = vmul.f32 %v372, 0.5
        %v375 = vmul.f32 %v373, 0.5
        %376 = vst [vmem:[%s257] sm:$0xff] %v374
        %377 = vst [vmem:[%s257 + $0x8] sm:$0xff] %v375
      $region40: #{ccg_dlnn_layer_forward.1} parent=31 // pred_fallthru
        _
      %s378 = smul.u32 2, %s19
      %p379 = scmp.lt.s32.totalorder %s378, 3
      %s380 = scalar_select %p379, %s378, 3
      %p381 = scmp.lt.s32.totalorder %s20, 0
      %s382 = scalar_select %p381, %s20, 0
      %s383 = sadd.s32 %s382, %s380
      %s384 = smul.addr %s383, 8
      %s385 = scalar_lea.vmem %s3, %s384
      // Predicated region
      $region41: #{ccg_dlnn_layer_forward.1} parent=31 // pred_check
        %p386 = pneg %p135
      $region42: #{ccg_dlnn_layer_forward.1} parent=31 // pred_check_branch
        %388 = sbr.rel (%p386) target = $region44
      $region43: #{ccg_dlnn_layer_forward.1} parent=31 // pred_region
        %s389 = smul.u32 2, %s19
      $region44: #{ccg_dlnn_layer_forward.1} parent=31 // pred_fallthru
        _
    $region32: #{ccg_dlnn_layer_forward.1} parent=5 // pred_fallthru
      _
    %p390 = scmp.le.s32.totalorder 2, %s9
    // Predicated region
    $region45: #{ccg_dlnn_layer_forward.1} parent=5 // pred_check
      %p391 = pneg %p390
    $region46: #{ccg_dlnn_layer_forward.1} parent=5 // pred_check_branch
      %393 = sbr.rel (%p391) target = $region48
    $region47: #{ccg_dlnn_layer_forward.1} parent=5 // pred_region
      %s394 = ssub.s32 %s9, 2
      // Predicated region
      $region49: #{ccg_dlnn_layer_forward.1} parent=47 // pred_check
        %p395 = pneg %p141
      $region50: #{ccg_dlnn_layer_forward.1} parent=47 // pred_check_branch
        %397 = sbr.rel (%p395) target = $region52
      $region51: #{ccg_dlnn_layer_forward.1} parent=47 // pred_region
        %s398 = smul.u32 2, %s22
        %p399 = scmp.lt.s32.totalorder %s398, 3
        %s400 = scalar_select %p399, %s398, 3
        %p401 = scmp.lt.s32.totalorder %s23, 0
        %s402 = scalar_select %p401, %s23, 0
        %s403 = sadd.s32 %s402, %s400
        %s404 = smul.addr %s403, 8
        %s405 = scalar_lea.vmem %s3, %s404
      $region52: #{ccg_dlnn_layer_forward.1} parent=47 // pred_fallthru
        _
    $region48: #{ccg_dlnn_layer_forward.1} parent=5 // pred_fallthru
      _
  $region6: #{ccg_dlnn_layer_forward.1} parent=0 // loop_footer
    %s13 = sadd.s32 1, %s9
  $region7: #{ccg_dlnn_layer_forward.1} parent=0 // loop_footer_branch
    %8 = sbr.rel target = $region3
  $region8: #{ccg_dlnn_layer_forward.1} parent=0 // loop_exit
    _

</llo_original>
